<compile_context>
chip_gen: v7x
topology: tpu7x:2x2x1
jax: 0.10.0
libtpu: 0.0.40
codegen_flags: <defaults>
</compile_context>

<pallas_src>
import math

import jax
import jax.numpy as jnp
from jax.experimental import pallas as pl
from jax.experimental.pallas import tpu as pltpu


_SUBLANE = 8  # sublane width (second-to-last dim granularity)


def _round_up(n, m):
    return ((n + m - 1) // m) * m


def _pad_rows(arr, rows):
    if arr.shape[0] == rows:
        return arr
    return jnp.pad(arr, ((0, rows - arr.shape[0]), (0, 0)))


def _vmem_capacity_bytes():
    try:
        return int(pltpu.get_tpu_info().vmem_capacity_bytes)
    except Exception:
        return 64 * 2**20  # conservative: v7x per-TensorCore VMEM


def _vmem_limit(weight_bytes, stream_bytes, capacity):
    est = weight_bytes + stream_bytes + (4 << 20)
    ceiling = int(0.75 * capacity)       # ~48 MiB on v7x, ~96 MiB on v5e/v6e
    return int(min(ceiling, max(16 << 20, est)))


def _choose_tb(batch, stream_cols, budget_bytes):
    """Largest batch tile (multiple of 8, <=2048) whose streamed f32 footprint
    fits the budget, forced to give >= 2 grid steps when batch > 8 so v7x can
    shard the batch axis across both TensorCores."""
    b8 = _round_up(batch, _SUBLANE)
    tb = min(2048, b8)
    while tb > _SUBLANE and 4 * tb * stream_cols > budget_bytes:
        tb = _round_up(tb // 2, _SUBLANE)
    if tb >= b8 and b8 > _SUBLANE:       # ensure >= 2 grid steps (v7x megacore)
        tb = _round_up(pl.cdiv(b8, 2), _SUBLANE)
    return max(tb, _SUBLANE)


# ---------------------------------------------------------------------------
# Kernels
# ---------------------------------------------------------------------------
def _linear_kernel(x_ref, w_ref, b_ref, o_ref):
    # y = x @ W + b   (f32 MXU accumulation, exact f32 passes)
    y = jnp.dot(x_ref[...], w_ref[...],
                preferred_element_type=jnp.float32,
                precision=jax.lax.Precision.HIGHEST)
    o_ref[...] = (y + b_ref[...]).astype(o_ref.dtype)


def _mlp_kernel(x_ref, w1_ref, b1_ref, w2_ref, b2_ref, o_ref):
    # y = relu(x @ W1 + b1) @ W2 + b2
    h = jnp.dot(x_ref[...], w1_ref[...],
                preferred_element_type=jnp.float32,
                precision=jax.lax.Precision.HIGHEST)
    h = jnp.maximum(h + b1_ref[...], 0.0)        # f32 VPU bias + ReLU
    h = h.astype(w2_ref.dtype)                   # no-op for f32; ready for bf16 TODO
    y = jnp.dot(h, w2_ref[...],
                preferred_element_type=jnp.float32,
                precision=jax.lax.Precision.HIGHEST)
    o_ref[...] = (y + b2_ref[...]).astype(o_ref.dtype)


# ---------------------------------------------------------------------------
# Wrappers
# ---------------------------------------------------------------------------
def linear_forward(x, w, b):
    """x: (B, D), w: (D, O), b: (1, O) -> (B, O)."""
    B, D = x.shape
    O = w.shape[1]

    capacity = _vmem_capacity_bytes()
    weight_bytes = 4 * (w.size + b.size)
    stream_cols = 2 * D + 2 * O                      # dbl-buffered x + out tiles
    budget = max(2 << 20, int(0.5 * capacity) - weight_bytes - (4 << 20))
    TB = _choose_tb(B, stream_cols, budget)
    B_pad = _round_up(B, TB)
    x_p = _pad_rows(x, B_pad)
    stream_bytes = 4 * TB * stream_cols

    out = pl.pallas_call(
        _linear_kernel,
        out_shape=jax.ShapeDtypeStruct((B_pad, O), x.dtype),
        grid=(B_pad // TB,),
        in_specs=[
            pl.BlockSpec((TB, D), lambda i: (i, 0)),   # streamed x tiles (unpadded D)
            pl.BlockSpec((D, O), lambda i: (0, 0)),    # resident weight (full dims)
            pl.BlockSpec((1, O), lambda i: (0, 0)),    # resident bias
        ],
        out_specs=pl.BlockSpec((TB, O), lambda i: (i, 0)),  # unpadded output lanes
        compiler_params=pltpu.CompilerParams(
            dimension_semantics=("parallel",),
            vmem_limit_bytes=_vmem_limit(weight_bytes, stream_bytes, capacity),
        ),
    )(x_p, w, b)
    return out[:B]                                    # rows only; no column slice


def mlp_forward(x, w1, b1, w2, b2):
    """x: (B, D) -> (B, O) via Linear -> ReLU -> Linear."""
    B, D = x.shape
    O = w2.shape[1]

    capacity = _vmem_capacity_bytes()
    weight_bytes = 4 * (w1.size + b1.size + w2.size + b2.size)
    # dbl-buffered x/out tiles + hidden h + MXU result buffers.
    stream_cols = 2 * D + 2 * O + 2 * D + O
    budget = max(2 << 20, int(0.5 * capacity) - weight_bytes - (4 << 20))
    TB = _choose_tb(B, stream_cols, budget)
    B_pad = _round_up(B, TB)
    x_p = _pad_rows(x, B_pad)
    stream_bytes = 4 * TB * stream_cols

    out = pl.pallas_call(
        _mlp_kernel,
        out_shape=jax.ShapeDtypeStruct((B_pad, O), x.dtype),
        grid=(B_pad // TB,),
        in_specs=[
            pl.BlockSpec((TB, D), lambda i: (i, 0)),   # streamed x tiles
            pl.BlockSpec((D, D), lambda i: (0, 0)),    # resident W1
            pl.BlockSpec((1, D), lambda i: (0, 0)),    # resident b1
            pl.BlockSpec((D, O), lambda i: (0, 0)),    # resident W2
            pl.BlockSpec((1, O), lambda i: (0, 0)),    # resident b2
        ],
        out_specs=pl.BlockSpec((TB, O), lambda i: (i, 0)),
        compiler_params=pltpu.CompilerParams(
            dimension_semantics=("parallel",),
            vmem_limit_bytes=_vmem_limit(weight_bytes, stream_bytes, capacity),
        ),
    )(x_p, w1, b1, w2, b2)
    return out[:B]


class ProbingClassifier:
    """JAX/Pallas port of the PyTorch ProbingClassifier (forward only)."""

    def __init__(self, embed_dim, output_dim, linear=True, key=None):
        if key is None:
            key = jax.random.PRNGKey(0)
        self.linear = linear
        self.embed_dim = embed_dim
        self.output_dim = output_dim

        def init_linear(k, fan_in, fan_out):
            # PyTorch nn.Linear default init: U(-1/sqrt(fan_in), 1/sqrt(fan_in)).
            # Weight stored pre-transposed as (fan_in, fan_out) for x @ W;
            # bias pre-shaped (1, fan_out) so there is no per-call reshape.
            kw, kb = jax.random.split(k)
            bound = 1.0 / math.sqrt(fan_in)
            w = jax.random.uniform(kw, (fan_in, fan_out), jnp.float32, -bound, bound)
            b = jax.random.uniform(kb, (1, fan_out), jnp.float32, -bound, bound)
            return w, b

        if linear:
            self.w, self.b = init_linear(key, embed_dim, output_dim)
        else:
            k1, k2 = jax.random.split(key)
            self.w1, self.b1 = init_linear(k1, embed_dim, embed_dim)
            self.w2, self.b2 = init_linear(k2, embed_dim, output_dim)

    def __call__(self, x):
        if self.linear:
            return linear_forward(x, self.w, self.b)
        return mlp_forward(x, self.w1, self.b1, self.w2, self.b2)


# ---------------------------------------------------------------------------
# Main
# ---------------------------------------------------------------------------
if __name__ == "__main__":
    key = jax.random.PRNGKey(0)
    kx, kp1, kp2 = jax.random.split(key, 3)

    batch = 10          # deliberately not a multiple of 8 -> exercises row padding
    embed_dim = 32
    output_dim = 8

    x = jax.random.normal(kx, (batch, embed_dim), jnp.float32)

    # linear=True variant (single Linear)
    model_lin = ProbingClassifier(embed_dim, output_dim, linear=True, key=kp1)
    y_lin = model_lin(x)
    jax.block_until_ready(y_lin)
    ref_lin = x @ model_lin.w + model_lin.b
    assert y_lin.shape == (batch, output_dim)
    assert jnp.allclose(y_lin, ref_lin, atol=1e-5, rtol=1e-5)

    # linear=False variant (Linear -> ReLU -> Linear)
    model_mlp = ProbingClassifier(embed_dim, output_dim, linear=False, key=kp2)
    y_mlp = model_mlp(x)
    jax.block_until_ready(y_mlp)
    h_ref = jnp.maximum(x @ model_mlp.w1 + model_mlp.b1, 0.0)
    ref_mlp = h_ref @ model_mlp.w2 + model_mlp.b2
    assert y_mlp.shape == (batch, output_dim)
    assert jnp.allclose(y_mlp, ref_mlp, atol=1e-5, rtol=1e-5)

    print("KERNEL_OK")
</pallas_src>

<mosaic_0001>
module attributes {stable_mosaic.version = 11 : i64} {
  func.func @_linear_kernel(%arg0: i32, %arg1: memref<8x32xf32, #tpu.memory_space<vmem>>, %arg2: memref<32x8xf32, #tpu.memory_space<vmem>>, %arg3: memref<1x8xf32, #tpu.memory_space<vmem>>, %arg4: memref<8x8xf32, #tpu.memory_space<vmem>>) attributes {dimension_semantics = [#tpu.dimension_semantics<parallel>], iteration_bounds = array<i64: 2>, scalar_prefetch = 0 : i64, scratch_operands = 0 : i64, tpu.core_type = #tpu.core_type<tc>, window_params = [{transform_indices = @transform_0, window_bounds = array<i64: 8, 32>}, {pipeline_mode = #tpu.pipeline_mode<synchronous>, transform_indices = @transform_1, window_bounds = array<i64: 32, 8>}, {pipeline_mode = #tpu.pipeline_mode<synchronous>, transform_indices = @transform_2, window_bounds = array<i64: 1, 8>}, {transform_indices = @transform_3, window_bounds = array<i64: 8, 8>}]} {
    %c0 = arith.constant 0 : index
    %c0_0 = arith.constant 0 : index
    %0 = vector.load %arg1[%c0, %c0_0] : memref<8x32xf32, #tpu.memory_space<vmem>>, vector<8x32xf32>
    %c0_1 = arith.constant 0 : index
    %c0_2 = arith.constant 0 : index
    %1 = vector.load %arg2[%c0_1, %c0_2] : memref<32x8xf32, #tpu.memory_space<vmem>>, vector<32x8xf32>
    %cst = arith.constant dense<0.000000e+00> : vector<8x8xf32>
    %2 = tpu.matmul %0, %1, %cst {dimension_numbers = #tpu.dot_dimension_numbers<[1], [0], [0], [1], [0, 0, 1, 1], [], []>, precision = #tpu.contract_precision<fp32>} : vector<8x32xf32>, vector<32x8xf32>, vector<8x8xf32> -> vector<8x8xf32>
    %c0_3 = arith.constant 0 : index
    %c0_4 = arith.constant 0 : index
    %3 = vector.load %arg3[%c0_3, %c0_4] : memref<1x8xf32, #tpu.memory_space<vmem>>, vector<1x8xf32>
    %4 = vector.broadcast %3 : vector<1x8xf32> to vector<8x8xf32>
    %5 = arith.addf %2, %4 : vector<8x8xf32>
    %c0_5 = arith.constant 0 : index
    %c0_6 = arith.constant 0 : index
    %6 = vector.load %arg4[%c0_5, %c0_6] : memref<8x8xf32, #tpu.memory_space<vmem>>, vector<8x8xf32>
    tpu.vector_store %arg4[%c0_5, %c0_6], %5 {strides = array<i32>} : memref<8x8xf32, #tpu.memory_space<vmem>>, vector<8x8xf32>,
    return
  }
  func.func @transform_0(%arg0: i32) -> (i32, i32) {
    %c0_i32 = arith.constant 0 : i32
    %c0_i32_0 = arith.constant 0 : i32
    return %arg0, %c0_i32 : i32, i32
  }
  func.func @transform_1(%arg0: i32) -> (i32, i32) {
    %c0_i32 = arith.constant 0 : i32
    %c0_i32_0 = arith.constant 0 : i32
    %c0_i32_1 = arith.constant 0 : i32
    return %c0_i32, %c0_i32_0 : i32, i32
  }
  func.func @transform_2(%arg0: i32) -> (i32, i32) {
    %c0_i32 = arith.constant 0 : i32
    %c0_i32_0 = arith.constant 0 : i32
    %c0_i32_1 = arith.constant 0 : i32
    return %c0_i32, %c0_i32_0 : i32, i32
  }
  func.func @transform_3(%arg0: i32) -> (i32, i32) {
    %c0_i32 = arith.constant 0 : i32
    %c0_i32_0 = arith.constant 0 : i32
    return %arg0, %c0_i32 : i32, i32
  }
}

</mosaic_0001>

<llo_original>
// kernel: tpu_custom_call.1
$region0: #{tpu_custom_call.1}
  #allocation0 [shape = 'u32[]', space=smem, size = 0x4, offset = 0x4, fixed_abs, tag = 'smem constant byte address 0x4 - core index']
  #allocation1 [shape = 'u32[144,128]{1,0:T(1,128)}', space=vmem, size = 0x12000, scoped, tag = 'internal scratch']
  %s0 = inlined_call_operand.vmem [shape: f32[16,32], index: 0, kind: input, shape index: {}]
  %s1 = inlined_call_operand.vmem [shape: f32[32,8], index: 1, kind: input, shape index: {}]
  %s2 = inlined_call_operand.vmem [shape: f32[1,8], index: 2, kind: input, shape index: {}]
  %s3 = inlined_call_operand.vmem [shape: f32[16,8], index: 3, kind: output, shape index: {}]
  %s4 = sld [smem:[#allocation0]]
  $region45: #{tpu_custom_call.1} parent=0
    _
  %s6 = ssub.s32 1, %s4
  %s7 = scalar_select 0, %s6, %s4
  loop: start=0, step=1, limit=4
  $region2: #{tpu_custom_call.1} parent=0 // loop_pre_header
    _
  $region3: #{tpu_custom_call.1} parent=0 // loop_header
    %s9 = sphi 0, %s13
    %p10 = scmp.ge.s32.totalorder %s9, 4
    %s19 = sphi 0, %s21
    %s22 = sphi 0, %s19
    %s23 = sphi 0, %s22
    %s39 = sphi 0, %s23
    %s43 = sphi 0, %s43
    %s45 = sphi 0, %s43
    %s46 = sphi 0, %s45
    %s60 = sphi 0, %s46
    %s64 = sphi 0, %s64
    %s66 = sphi 0, %s64
    %s67 = sphi 0, %s66
    %s81 = sphi 0, %s67
    %s87 = sphi 0, %s89
    %s90 = sphi 0, %s87
    %s91 = sphi 0, %s90
    %s107 = sphi 0, %s91
  $region4: #{tpu_custom_call.1} parent=0 // loop_header_branch
    %12 = sbr.rel (%p10) target = $region8
  $region5: #{tpu_custom_call.1} parent=0 // loop_body
    %s14 = ssub.s32 %s9, 1
    %s15 = ssub.s32 %s9, 2
    %s16 = sadd.s32 %s9, 1
    %s17 = ssub.s32 %s9, %s16
    %p18 = scmp.eq.s32.totalorder %s17, 0
    %s20 = sadd.s32 %s19, 1
    %s21 = scalar_select %p18, %s19, %s20
    %p24 = pneg %p18
    %p25 = scmp.eq.s32.totalorder %s9, 1
    %p26 = por %p24, %p25
    %p27 = scmp.ne.s32.totalorder %s19, %s22
    %p28 = scmp.eq.s32.totalorder %s9, 0
    %p29 = por %p27, %p28
    %p30 = scmp.ne.s32.totalorder %s19, %s22
    %p31 = scmp.eq.s32.totalorder %s14, 1
    %p32 = por %p30, %p31
    %p33 = scmp.ne.s32.totalorder %s22, %s23
    %p34 = scmp.eq.s32.totalorder %s14, 0
    %p35 = por %p33, %p34
    %p36 = scmp.ne.s32.totalorder %s22, %s23
    %p37 = scmp.eq.s32.totalorder %s15, 1
    %p38 = por %p36, %p37
    %p40 = scmp.ne.s32.totalorder %s23, %s39
    %p41 = scmp.eq.s32.totalorder %s15, 0
    %p42 = por %p40, %p41
    %s44 = sadd.s32 %s43, 1
    %p47 = scmp.eq.s32.totalorder %s9, 1
    %p48 = scmp.ne.s32.totalorder %s43, %s45
    %p49 = scmp.eq.s32.totalorder %s9, 0
    %p50 = por %p48, %p49
    %p51 = scmp.ne.s32.totalorder %s43, %s45
    %p52 = scmp.eq.s32.totalorder %s14, 1
    %p53 = por %p51, %p52
    %p54 = scmp.ne.s32.totalorder %s45, %s46
    %p55 = scmp.eq.s32.totalorder %s14, 0
    %p56 = por %p54, %p55
    %p57 = scmp.ne.s32.totalorder %s45, %s46
    %p58 = scmp.eq.s32.totalorder %s15, 1
    %p59 = por %p57, %p58
    %p61 = scmp.ne.s32.totalorder %s46, %s60
    %p62 = scmp.eq.s32.totalorder %s15, 0
    %p63 = por %p61, %p62
    %s65 = sadd.s32 %s64, 1
    %p68 = scmp.eq.s32.totalorder %s9, 1
    %p69 = scmp.ne.s32.totalorder %s64, %s66
    %p70 = scmp.eq.s32.totalorder %s9, 0
    %p71 = por %p69, %p70
    %p72 = scmp.ne.s32.totalorder %s64, %s66
    %p73 = scmp.eq.s32.totalorder %s14, 1
    %p74 = por %p72, %p73
    %p75 = scmp.ne.s32.totalorder %s66, %s67
    %p76 = scmp.eq.s32.totalorder %s14, 0
    %p77 = por %p75, %p76
    %p78 = scmp.ne.s32.totalorder %s66, %s67
    %p79 = scmp.eq.s32.totalorder %s15, 1
    %p80 = por %p78, %p79
    %p82 = scmp.ne.s32.totalorder %s67, %s81
    %p83 = scmp.eq.s32.totalorder %s15, 0
    %p84 = por %p82, %p83
    %s85 = ssub.s32 %s9, %s16
    %p86 = scmp.eq.s32.totalorder %s85, 0
    %s88 = sadd.s32 %s87, 1
    %s89 = scalar_select %p86, %s87, %s88
    %p92 = pneg %p86
    %p93 = scmp.eq.s32.totalorder %s9, 1
    %p94 = por %p92, %p93
    %p95 = scmp.ne.s32.totalorder %s87, %s90
    %p96 = scmp.eq.s32.totalorder %s9, 0
    %p97 = por %p95, %p96
    %p98 = scmp.ne.s32.totalorder %s87, %s90
    %p99 = scmp.eq.s32.totalorder %s14, 1
    %p100 = por %p98, %p99
    %p101 = scmp.ne.s32.totalorder %s90, %s91
    %p102 = scmp.eq.s32.totalorder %s14, 0
    %p103 = por %p101, %p102
    %p104 = scmp.ne.s32.totalorder %s90, %s91
    %p105 = scmp.eq.s32.totalorder %s15, 1
    %p106 = por %p104, %p105
    %p108 = scmp.ne.s32.totalorder %s91, %s107
    %p109 = scmp.eq.s32.totalorder %s15, 0
    %p110 = por %p108, %p109
    %p111 = scmp.le.s32.totalorder 1, %s9
    %p112 = scmp.lt.s32.totalorder %s9, 3
    %p113 = pnand %p111, %p112
    %p114 = pneg %p113
    // Predicated region
    $region9: #{tpu_custom_call.1} parent=5 // pred_check
      _
    $region10: #{tpu_custom_call.1} parent=5 // pred_check_branch
      %116 = sbr.rel (%p113) target = $region12
    $region11: #{tpu_custom_call.1} parent=5 // pred_region
      %s117 = ssub.s32 %s9, 1
      // Predicated region
      $region13: #{tpu_custom_call.1} parent=11 // pred_check
        %p118 = pneg %p56
      $region14: #{tpu_custom_call.1} parent=11 // pred_check_branch
        %120 = sbr.rel (%p118) target = $region16
      $region15: #{tpu_custom_call.1} parent=11 // pred_region
        _
      $region16: #{tpu_custom_call.1} parent=11 // pred_fallthru
        _
      // Predicated region
      $region17: #{tpu_custom_call.1} parent=11 // pred_check
        %p121 = pneg %p77
      $region18: #{tpu_custom_call.1} parent=11 // pred_check_branch
        %123 = sbr.rel (%p121) target = $region20
      $region19: #{tpu_custom_call.1} parent=11 // pred_region
        _
      $region20: #{tpu_custom_call.1} parent=11 // pred_fallthru
        _
    $region12: #{tpu_custom_call.1} parent=5 // pred_fallthru
      _
    %p124 = scmp.lt.s32.totalorder %s9, 2
    // Predicated region
    $region21: #{tpu_custom_call.1} parent=5 // pred_check
      %p125 = pneg %p124
    $region22: #{tpu_custom_call.1} parent=5 // pred_check_branch
      %127 = sbr.rel (%p125) target = $region24
    $region23: #{tpu_custom_call.1} parent=5 // pred_region
      // Predicated region
      $region25: #{tpu_custom_call.1} parent=23 // pred_check
        %p128 = pneg %p29
      $region26: #{tpu_custom_call.1} parent=23 // pred_check_branch
        %130 = sbr.rel (%p128) target = $region28
      $region27: #{tpu_custom_call.1} parent=23 // pred_region
        %p131 = scmp.lt.s32.totalorder %s9, 1
        %s132 = scalar_select %p131, %s9, 1
        %s133 = smul.addr %s132, 8
        %s134 = scalar_lea.vmem %s0, %s133
      $region28: #{tpu_custom_call.1} parent=23 // pred_fallthru
        _
    $region24: #{tpu_custom_call.1} parent=5 // pred_fallthru
      _
    %p135 = scmp.le.s32.totalorder 1, %s9
    %p136 = scmp.lt.s32.totalorder %s9, 3
    %p137 = pnand %p135, %p136
    %p138 = pneg %p137
    // Predicated region
    $region29: #{tpu_custom_call.1} parent=5 // pred_check
      _
    $region30: #{tpu_custom_call.1} parent=5 // pred_check_branch
      %140 = sbr.rel (%p137) target = $region32
    $region31: #{tpu_custom_call.1} parent=5 // pred_region
      %s141 = ssub.s32 %s9, 1
      %p142 = scmp.lt.s32.totalorder %s14, 1
      %s143 = scalar_select %p142, %s14, 1
      %s144 = smul.addr %s143, 8
      %s145 = scalar_lea.vmem %s0, %s144
      %p146 = pneg %p35
      %p147 = pneg %p32
      %p148 = pneg %p56
      %p149 = pneg %p53
      %p150 = pneg %p77
      %p151 = pneg %p74
      %p152 = pneg %p103
      %p153 = pneg %p100
      %p154 = scmp.lt.s32.totalorder %s14, 1
      %s155 = scalar_select %p154, %s14, 1
      %s156 = smul.addr %s155, 8
      %s157 = scalar_lea.vmem %s3, %s156
      %p158 = scmp.lt.s32.totalorder %s14, 1
      %s159 = scalar_select %p158, %s14, 1
      %s160 = smul.addr %s159, 8
      %s161 = scalar_lea.vmem %s0, %s160
      %p162 = scmp.lt.s32.totalorder %s14, 1
      %s163 = scalar_select %p162, %s14, 1
      %s164 = smul.addr %s163, 8
      %s165 = scalar_lea.vmem %s3, %s164
      %v166 = vld [vmem:[%s161] sm:$0xff]
      %v167 = vld [vmem:[%s1] sm:$0xff]
      %v168 = vld [vmem:[%s1 + $0x8] sm:$0xff]
      %v169 = vld [vmem:[%s1 + $0x10] sm:$0xff]
      %v170 = vld [vmem:[%s1 + $0x18] sm:$0xff]
      %v171 = vld [vmem:[%s2] sm:$0x1]
      %v173 = vlaneseq
      %v174 = vshrl.u32 %v173, 7
      %v175 = vsub.s32 0, %v174
      %v176 = vrot.slane %v171, %v175
      %vm178 = vcmask 261120
      %v180 = vsel %vm178, %v166, 0
      %182 = vmatprep.subr.mxu0 0.0
      %v183 = vand.u32 %v167, 4294901760
      %184 = vmatpush1.msra.mxu0 %v183
      %185 = vmatprep.subr.mxu0 0.0
      %v186 = vand.u32 %v168, 4294901760
      %187 = vmatpush1.msra.mxu0 %v186
      %188 = vmatprep.subr.mxu0 0.0
      %v189 = vand.u32 %v169, 4294901760
      %190 = vmatpush1.msra.mxu0 %v189
      %191 = vmatprep.subr.mxu0 0.0
      %v192 = vand.u32 %v170, 4294901760
      %193 = vmatpush1.msra.mxu0 %v192
      %194 = vmatprep.subr.mxu0 0.0
      %195 = vmatpush1.msra.mxu0 0.0
      %196 = vmatprep.subr.mxu0 0.0
      %197 = vmatpush1.msra.mxu0 0.0
      %198 = vmatprep.subr.mxu0 0.0
      %199 = vmatpush1.msra.mxu0 0.0
      %200 = vmatprep.subr.mxu0 0.0
      %201 = vmatpush1.msra.mxu0 0.0
      %202 = vmatprep.subr.mxu0 0.0
      %203 = vmatpush1.msra.mxu0 0.0
      %204 = vmatprep.subr.mxu0 0.0
      %205 = vmatpush1.msra.mxu0 0.0
      %206 = vmatprep.subr.mxu0 0.0
      %207 = vmatpush1.msra.mxu0 0.0
      %208 = vmatprep.subr.mxu0 0.0
      %209 = vmatpush1.msra.mxu0 0.0
      %210 = vmatprep.subr.mxu0 0.0
      %211 = vmatpush1.msra.mxu0 0.0
      %212 = vmatprep.subr.mxu0 0.0
      %213 = vmatpush1.msra.mxu0 0.0
      %214 = vmatprep.subr.mxu0 0.0
      %215 = vmatpush1.msra.mxu0 0.0
      %216 = vmatprep.subr.mxu0 0.0
      %217 = vmatpush1.msra.mxu0 0.0
      %218 = vmatprep.subr.mxu0 0.0
      %219 = vmatpush1.msra.mxu0 0.0
      %220 = vmatprep.subr.mxu0 0.0
      %221 = vmatpush1.msra.mxu0 0.0
      %222 = vmatprep.subr.mxu0 0.0
      %223 = vmatpush1.msra.mxu0 0.0
      %224 = vmatprep.subr.mxu0 0.0
      %225 = vmatpush1.msra.mxu0 0.0
      %226 = vmatprep.subr.mxu0 0.0
      %227 = vmatpush1.msra.mxu0 0.0
      %228 = vmatprep.subr.mxu0 0.0
      %229 = vmatpush1.msra.mxu0 0.0
      %230 = vmatprep.subr.mxu0 0.0
      %231 = vmatpush1.msra.mxu0 0.0
      %232 = vmatprep.subr.mxu0 0.0
      %233 = vmatpush1.msra.mxu0 0.0
      %234 = vmatprep.subr.mxu0 0.0
      %235 = vmatpush1.msra.mxu0 0.0
      %236 = vmatprep.subr.mxu0 0.0
      %237 = vmatpush1.msra.mxu0 0.0
      %238 = vmatprep.subr.mxu0 0.0
      %239 = vmatpush1.msra.mxu0 0.0
      %240 = vmatprep.subr.mxu0 0.0
      %241 = vmatpush1.msra.mxu0 0.0
      %242 = vmatprep.subr.mxu0 0.0
      %243 = vmatpush1.msra.mxu0 0.0
      %244 = vmatprep.subr.mxu0 0.0
      %245 = vmatpush1.msra.mxu0 0.0
      %246 = vmatprep.subr.mxu0 0.0
      %247 = vmatpush1.msra.mxu0 0.0
      %248 = vmatprep.subr.mxu0 0.0
      %249 = vmatpush1.msra.mxu0 0.0
      %250 = vmatprep.mubr.f32.mxu0 0.0
      %v251 = vand.u32 %v180, 4294901760
      %v252 = vsub.f32 %v180, %v251
      %v253 = vand.u32 %v252, 4294901760
      %v254 = vsub.f32 %v252, %v253
      %v255 = vand.u32 %v254, 4294901760
      %256 = vmatmul.mubr.f32.gmra.mrb[0].mxu0 %v255
      %v257 = vpop.f32.mrb[0].mxu0
      %v258 = vadd.f32 %v176, %v257
      %v259 = vpop.f32.mrb[0].mxu0
      %260 = vdwg.mxu0
      %261 = vmatprep.subr.mxu0 0.0
      %v262 = vand.u32 %v167, 4294901760
      %v263 = vsub.f32 %v167, %v262
      %v264 = vand.u32 %v263, 4294901760
      %v265 = vsub.f32 %v263, %v264
      %v266 = vand.u32 %v265, 4294901760
      %267 = vmatpush1.msra.mxu0 %v266
      %268 = vmatprep.subr.mxu0 0.0
      %v269 = vand.u32 %v168, 4294901760
      %v270 = vsub.f32 %v168, %v269
      %v271 = vand.u32 %v270, 4294901760
      %v272 = vsub.f32 %v270, %v271
      %v273 = vand.u32 %v272, 4294901760
      %274 = vmatpush1.msra.mxu0 %v273
      %275 = vmatprep.subr.mxu0 0.0
      %v276 = vand.u32 %v169, 4294901760
      %v277 = vsub.f32 %v169, %v276
      %v278 = vand.u32 %v277, 4294901760
      %v279 = vsub.f32 %v277, %v278
      %v280 = vand.u32 %v279, 4294901760
      %281 = vmatpush1.msra.mxu0 %v280
      %282 = vmatprep.subr.mxu0 0.0
      %v283 = vand.u32 %v170, 4294901760
      %v284 = vsub.f32 %v170, %v283
      %v285 = vand.u32 %v284, 4294901760
      %v286 = vsub.f32 %v284, %v285
      %v287 = vand.u32 %v286, 4294901760
      %288 = vmatpush1.msra.mxu0 %v287
      %289 = vmatprep.subr.mxu0 0.0
      %290 = vmatpush1.msra.mxu0 0.0
      %291 = vmatprep.subr.mxu0 0.0
      %292 = vmatpush1.msra.mxu0 0.0
      %293 = vmatprep.subr.mxu0 0.0
      %294 = vmatpush1.msra.mxu0 0.0
      %295 = vmatprep.subr.mxu0 0.0
      %296 = vmatpush1.msra.mxu0 0.0
      %297 = vmatprep.subr.mxu0 0.0
      %298 = vmatpush1.msra.mxu0 0.0
      %299 = vmatprep.subr.mxu0 0.0
      %300 = vmatpush1.msra.mxu0 0.0
      %301 = vmatprep.subr.mxu0 0.0
      %302 = vmatpush1.msra.mxu0 0.0
      %303 = vmatprep.subr.mxu0 0.0
      %304 = vmatpush1.msra.mxu0 0.0
      %305 = vmatprep.subr.mxu0 0.0
      %306 = vmatpush1.msra.mxu0 0.0
      %307 = vmatprep.subr.mxu0 0.0
      %308 = vmatpush1.msra.mxu0 0.0
      %309 = vmatprep.subr.mxu0 0.0
      %310 = vmatpush1.msra.mxu0 0.0
      %311 = vmatprep.subr.mxu0 0.0
      %312 = vmatpush1.msra.mxu0 0.0
      %313 = vmatprep.subr.mxu0 0.0
      %314 = vmatpush1.msra.mxu0 0.0
      %315 = vmatprep.subr.mxu0 0.0
      %316 = vmatpush1.msra.mxu0 0.0
      %317 = vmatprep.subr.mxu0 0.0
      %318 = vmatpush1.msra.mxu0 0.0
      %319 = vmatprep.subr.mxu0 0.0
      %320 = vmatpush1.msra.mxu0 0.0
      %321 = vmatprep.subr.mxu0 0.0
      %322 = vmatpush1.msra.mxu0 0.0
      %323 = vmatprep.subr.mxu0 0.0
      %324 = vmatpush1.msra.mxu0 0.0
      %325 = vmatprep.subr.mxu0 0.0
      %326 = vmatpush1.msra.mxu0 0.0
      %327 = vmatprep.subr.mxu0 0.0
      %328 = vmatpush1.msra.mxu0 0.0
      %329 = vmatprep.subr.mxu0 0.0
      %330 = vmatpush1.msra.mxu0 0.0
      %331 = vmatprep.subr.mxu0 0.0
      %332 = vmatpush1.msra.mxu0 0.0
      %333 = vmatprep.subr.mxu0 0.0
      %334 = vmatpush1.msra.mxu0 0.0
      %335 = vmatprep.subr.mxu0 0.0
      %336 = vmatpush1.msra.mxu0 0.0
      %337 = vmatprep.subr.mxu0 0.0
      %338 = vmatpush1.msra.mxu0 0.0
      %339 = vmatprep.subr.mxu0 0.0
      %340 = vmatpush1.msra.mxu0 0.0
      %341 = vmatprep.subr.mxu0 0.0
      %342 = vmatpush1.msra.mxu0 0.0
      %343 = vmatprep.subr.mxu0 0.0
      %344 = vmatpush1.msra.mxu0 0.0
      %345 = vmatprep.mubr.f32.mxu0 0.0
      %v346 = vand.u32 %v180, 4294901760
      %347 = vmatmul.mubr.f32.gmra.mrb[0].mxu0 %v346
      %v348 = vpop.f32.mrb[0].mxu0
      %v349 = vadd.f32 %v258, %v348
      %v350 = vpop.f32.mrb[0].mxu0
      %351 = vdwg.mxu0
      %352 = vmatprep.subr.mxu0 0.0
      %v353 = vand.u32 %v167, 4294901760
      %v354 = vsub.f32 %v167, %v353
      %355 = vmatpush1.msra.mxu0 %v354
      %356 = vmatprep.subr.mxu0 0.0
      %v357 = vand.u32 %v168, 4294901760
      %v358 = vsub.f32 %v168, %v357
      %359 = vmatpush1.msra.mxu0 %v358
      %360 = vmatprep.subr.mxu0 0.0
      %v361 = vand.u32 %v169, 4294901760
      %v362 = vsub.f32 %v169, %v361
      %363 = vmatpush1.msra.mxu0 %v362
      %364 = vmatprep.subr.mxu0 0.0
      %v365 = vand.u32 %v170, 4294901760
      %v366 = vsub.f32 %v170, %v365
      %367 = vmatpush1.msra.mxu0 %v366
      %368 = vmatprep.subr.mxu0 0.0
      %369 = vmatpush1.msra.mxu0 0.0
      %370 = vmatprep.subr.mxu0 0.0
      %371 = vmatpush1.msra.mxu0 0.0
      %372 = vmatprep.subr.mxu0 0.0
      %373 = vmatpush1.msra.mxu0 0.0
      %374 = vmatprep.subr.mxu0 0.0
      %375 = vmatpush1.msra.mxu0 0.0
      %376 = vmatprep.subr.mxu0 0.0
      %377 = vmatpush1.msra.mxu0 0.0
      %378 = vmatprep.subr.mxu0 0.0
      %379 = vmatpush1.msra.mxu0 0.0
      %380 = vmatprep.subr.mxu0 0.0
      %381 = vmatpush1.msra.mxu0 0.0
      %382 = vmatprep.subr.mxu0 0.0
      %383 = vmatpush1.msra.mxu0 0.0
      %384 = vmatprep.subr.mxu0 0.0
      %385 = vmatpush1.msra.mxu0 0.0
      %386 = vmatprep.subr.mxu0 0.0
      %387 = vmatpush1.msra.mxu0 0.0
      %388 = vmatprep.subr.mxu0 0.0
      %389 = vmatpush1.msra.mxu0 0.0
      %390 = vmatprep.subr.mxu0 0.0
      %391 = vmatpush1.msra.mxu0 0.0
      %392 = vmatprep.subr.mxu0 0.0
      %393 = vmatpush1.msra.mxu0 0.0
      %394 = vmatprep.subr.mxu0 0.0
      %395 = vmatpush1.msra.mxu0 0.0
      %396 = vmatprep.subr.mxu0 0.0
      %397 = vmatpush1.msra.mxu0 0.0
      %398 = vmatprep.subr.mxu0 0.0
      %399 = vmatpush1.msra.mxu0 0.0
      %400 = vmatprep.subr.mxu0 0.0
      %401 = vmatpush1.msra.mxu0 0.0
      %402 = vmatprep.subr.mxu0 0.0
      %403 = vmatpush1.msra.mxu0 0.0
      %404 = vmatprep.subr.mxu0 0.0
      %405 = vmatpush1.msra.mxu0 0.0
      %406 = vmatprep.subr.mxu0 0.0
      %407 = vmatpush1.msra.mxu0 0.0
      %408 = vmatprep.subr.mxu0 0.0
      %409 = vmatpush1.msra.mxu0 0.0
      %410 = vmatprep.subr.mxu0 0.0
      %411 = vmatpush1.msra.mxu0 0.0
      %412 = vmatprep.subr.mxu0 0.0
      %413 = vmatpush1.msra.mxu0 0.0
      %414 = vmatprep.subr.mxu0 0.0
      %415 = vmatpush1.msra.mxu0 0.0
      %416 = vmatprep.subr.mxu0 0.0
      %417 = vmatpush1.msra.mxu0 0.0
      %418 = vmatprep.subr.mxu0 0.0
      %419 = vmatpush1.msra.mxu0 0.0
      %420 = vmatprep.subr.mxu0 0.0
      %421 = vmatpush1.msra.mxu0 0.0
      %422 = vmatprep.subr.mxu0 0.0
      %423 = vmatpush1.msra.mxu0 0.0
      %424 = vmatprep.mubr.f32.mxu0 0.0
      %v425 = vand.u32 %v180, 4294901760
      %v426 = vsub.f32 %v180, %v425
      %427 = vmatmul.mubr.f32.gmra.mrb[0].mxu0 %v426
      %v428 = vpop.f32.mrb[0].mxu0
      %v429 = vadd.f32 %v349, %v428
      %v430 = vpop.f32.mrb[0].mxu0
      %431 = vdwg.mxu0
      %432 = vmatprep.subr.mxu0 0.0
      %v433 = vand.u32 %v167, 4294901760
      %434 = vmatpush1.msra.mxu0 %v433
      %435 = vmatprep.subr.mxu0 0.0
      %v436 = vand.u32 %v168, 4294901760
      %437 = vmatpush1.msra.mxu0 %v436
      %438 = vmatprep.subr.mxu0 0.0
      %v439 = vand.u32 %v169, 4294901760
      %440 = vmatpush1.msra.mxu0 %v439
      %441 = vmatprep.subr.mxu0 0.0
      %v442 = vand.u32 %v170, 4294901760
      %443 = vmatpush1.msra.mxu0 %v442
      %444 = vmatprep.subr.mxu0 0.0
      %445 = vmatpush1.msra.mxu0 0.0
      %446 = vmatprep.subr.mxu0 0.0
      %447 = vmatpush1.msra.mxu0 0.0
      %448 = vmatprep.subr.mxu0 0.0
      %449 = vmatpush1.msra.mxu0 0.0
      %450 = vmatprep.subr.mxu0 0.0
      %451 = vmatpush1.msra.mxu0 0.0
      %452 = vmatprep.subr.mxu0 0.0
      %453 = vmatpush1.msra.mxu0 0.0
      %454 = vmatprep.subr.mxu0 0.0
      %455 = vmatpush1.msra.mxu0 0.0
      %456 = vmatprep.subr.mxu0 0.0
      %457 = vmatpush1.msra.mxu0 0.0
      %458 = vmatprep.subr.mxu0 0.0
      %459 = vmatpush1.msra.mxu0 0.0
      %460 = vmatprep.subr.mxu0 0.0
      %461 = vmatpush1.msra.mxu0 0.0
      %462 = vmatprep.subr.mxu0 0.0
      %463 = vmatpush1.msra.mxu0 0.0
      %464 = vmatprep.subr.mxu0 0.0
      %465 = vmatpush1.msra.mxu0 0.0
      %466 = vmatprep.subr.mxu0 0.0
      %467 = vmatpush1.msra.mxu0 0.0
      %468 = vmatprep.subr.mxu0 0.0
      %469 = vmatpush1.msra.mxu0 0.0
      %470 = vmatprep.subr.mxu0 0.0
      %471 = vmatpush1.msra.mxu0 0.0
      %472 = vmatprep.subr.mxu0 0.0
      %473 = vmatpush1.msra.mxu0 0.0
      %474 = vmatprep.subr.mxu0 0.0
      %475 = vmatpush1.msra.mxu0 0.0
      %476 = vmatprep.subr.mxu0 0.0
      %477 = vmatpush1.msra.mxu0 0.0
      %478 = vmatprep.subr.mxu0 0.0
      %479 = vmatpush1.msra.mxu0 0.0
      %480 = vmatprep.subr.mxu0 0.0
      %481 = vmatpush1.msra.mxu0 0.0
      %482 = vmatprep.subr.mxu0 0.0
      %483 = vmatpush1.msra.mxu0 0.0
      %484 = vmatprep.subr.mxu0 0.0
      %485 = vmatpush1.msra.mxu0 0.0
      %486 = vmatprep.subr.mxu0 0.0
      %487 = vmatpush1.msra.mxu0 0.0
      %488 = vmatprep.subr.mxu0 0.0
      %489 = vmatpush1.msra.mxu0 0.0
      %490 = vmatprep.subr.mxu0 0.0
      %491 = vmatpush1.msra.mxu0 0.0
      %492 = vmatprep.subr.mxu0 0.0
      %493 = vmatpush1.msra.mxu0 0.0
      %494 = vmatprep.subr.mxu0 0.0
      %495 = vmatpush1.msra.mxu0 0.0
      %496 = vmatprep.subr.mxu0 0.0
      %497 = vmatpush1.msra.mxu0 0.0
      %498 = vmatprep.subr.mxu0 0.0
      %499 = vmatpush1.msra.mxu0 0.0
      %500 = vmatprep.mubr.f32.mxu0 0.0
      %v501 = vand.u32 %v180, 4294901760
      %v502 = vsub.f32 %v180, %v501
      %v503 = vand.u32 %v502, 4294901760
      %504 = vmatmul.mubr.f32.gmra.mrb[0].mxu0 %v503
      %v505 = vpop.f32.mrb[0].mxu0
      %v506 = vadd.f32 %v429, %v505
      %v507 = vpop.f32.mrb[0].mxu0
      %508 = vdwg.mxu0
      %509 = vmatprep.subr.mxu0 0.0
      %v510 = vand.u32 %v167, 4294901760
      %v511 = vsub.f32 %v167, %v510
      %v512 = vand.u32 %v511, 4294901760
      %513 = vmatpush1.msra.mxu0 %v512
      %514 = vmatprep.subr.mxu0 0.0
      %v515 = vand.u32 %v168, 4294901760
      %v516 = vsub.f32 %v168, %v515
      %v517 = vand.u32 %v516, 4294901760
      %518 = vmatpush1.msra.mxu0 %v517
      %519 = vmatprep.subr.mxu0 0.0
      %v520 = vand.u32 %v169, 4294901760
      %v521 = vsub.f32 %v169, %v520
      %v522 = vand.u32 %v521, 4294901760
      %523 = vmatpush1.msra.mxu0 %v522
      %524 = vmatprep.subr.mxu0 0.0
      %v525 = vand.u32 %v170, 4294901760
      %v526 = vsub.f32 %v170, %v525
      %v527 = vand.u32 %v526, 4294901760
      %528 = vmatpush1.msra.mxu0 %v527
      %529 = vmatprep.subr.mxu0 0.0
      %530 = vmatpush1.msra.mxu0 0.0
      %531 = vmatprep.subr.mxu0 0.0
      %532 = vmatpush1.msra.mxu0 0.0
      %533 = vmatprep.subr.mxu0 0.0
      %534 = vmatpush1.msra.mxu0 0.0
      %535 = vmatprep.subr.mxu0 0.0
      %536 = vmatpush1.msra.mxu0 0.0
      %537 = vmatprep.subr.mxu0 0.0
      %538 = vmatpush1.msra.mxu0 0.0
      %539 = vmatprep.subr.mxu0 0.0
      %540 = vmatpush1.msra.mxu0 0.0
      %541 = vmatprep.subr.mxu0 0.0
      %542 = vmatpush1.msra.mxu0 0.0
      %543 = vmatprep.subr.mxu0 0.0
      %544 = vmatpush1.msra.mxu0 0.0
      %545 = vmatprep.subr.mxu0 0.0
      %546 = vmatpush1.msra.mxu0 0.0
      %547 = vmatprep.subr.mxu0 0.0
      %548 = vmatpush1.msra.mxu0 0.0
      %549 = vmatprep.subr.mxu0 0.0
      %550 = vmatpush1.msra.mxu0 0.0
      %551 = vmatprep.subr.mxu0 0.0
      %552 = vmatpush1.msra.mxu0 0.0
      %553 = vmatprep.subr.mxu0 0.0
      %554 = vmatpush1.msra.mxu0 0.0
      %555 = vmatprep.subr.mxu0 0.0
      %556 = vmatpush1.msra.mxu0 0.0
      %557 = vmatprep.subr.mxu0 0.0
      %558 = vmatpush1.msra.mxu0 0.0
      %559 = vmatprep.subr.mxu0 0.0
      %560 = vmatpush1.msra.mxu0 0.0
      %561 = vmatprep.subr.mxu0 0.0
      %562 = vmatpush1.msra.mxu0 0.0
      %563 = vmatprep.subr.mxu0 0.0
      %564 = vmatpush1.msra.mxu0 0.0
      %565 = vmatprep.subr.mxu0 0.0
      %566 = vmatpush1.msra.mxu0 0.0
      %567 = vmatprep.subr.mxu0 0.0
      %568 = vmatpush1.msra.mxu0 0.0
      %569 = vmatprep.subr.mxu0 0.0
      %570 = vmatpush1.msra.mxu0 0.0
      %571 = vmatprep.subr.mxu0 0.0
      %572 = vmatpush1.msra.mxu0 0.0
      %573 = vmatprep.subr.mxu0 0.0
      %574 = vmatpush1.msra.mxu0 0.0
      %575 = vmatprep.subr.mxu0 0.0
      %576 = vmatpush1.msra.mxu0 0.0
      %577 = vmatprep.subr.mxu0 0.0
      %578 = vmatpush1.msra.mxu0 0.0
      %579 = vmatprep.subr.mxu0 0.0
      %580 = vmatpush1.msra.mxu0 0.0
      %581 = vmatprep.subr.mxu0 0.0
      %582 = vmatpush1.msra.mxu0 0.0
      %583 = vmatprep.subr.mxu0 0.0
      %584 = vmatpush1.msra.mxu0 0.0
      %585 = vmatprep.mubr.f32.mxu0 0.0
      %v586 = vand.u32 %v180, 4294901760
      %587 = vmatmul.mubr.f32.gmra.mrb[0].mxu0 %v586
      %v588 = vpop.f32.mrb[0].mxu0
      %v589 = vadd.f32 %v506, %v588
      %v590 = vpop.f32.mrb[0].mxu0
      %591 = vdwg.mxu0
      %592 = vmatprep.subr.mxu0 0.0
      %v593 = vand.u32 %v167, 4294901760
      %594 = vmatpush1.msra.mxu0 %v593
      %595 = vmatprep.subr.mxu0 0.0
      %v596 = vand.u32 %v168, 4294901760
      %597 = vmatpush1.msra.mxu0 %v596
      %598 = vmatprep.subr.mxu0 0.0
      %v599 = vand.u32 %v169, 4294901760
      %600 = vmatpush1.msra.mxu0 %v599
      %601 = vmatprep.subr.mxu0 0.0
      %v602 = vand.u32 %v170, 4294901760
      %603 = vmatpush1.msra.mxu0 %v602
      %604 = vmatprep.subr.mxu0 0.0
      %605 = vmatpush1.msra.mxu0 0.0
      %606 = vmatprep.subr.mxu0 0.0
      %607 = vmatpush1.msra.mxu0 0.0
      %608 = vmatprep.subr.mxu0 0.0
      %609 = vmatpush1.msra.mxu0 0.0
      %610 = vmatprep.subr.mxu0 0.0
      %611 = vmatpush1.msra.mxu0 0.0
      %612 = vmatprep.subr.mxu0 0.0
      %613 = vmatpush1.msra.mxu0 0.0
      %614 = vmatprep.subr.mxu0 0.0
      %615 = vmatpush1.msra.mxu0 0.0
      %616 = vmatprep.subr.mxu0 0.0
      %617 = vmatpush1.msra.mxu0 0.0
      %618 = vmatprep.subr.mxu0 0.0
      %619 = vmatpush1.msra.mxu0 0.0
      %620 = vmatprep.subr.mxu0 0.0
      %621 = vmatpush1.msra.mxu0 0.0
      %622 = vmatprep.subr.mxu0 0.0
      %623 = vmatpush1.msra.mxu0 0.0
      %624 = vmatprep.subr.mxu0 0.0
      %625 = vmatpush1.msra.mxu0 0.0
      %626 = vmatprep.subr.mxu0 0.0
      %627 = vmatpush1.msra.mxu0 0.0
      %628 = vmatprep.subr.mxu0 0.0
      %629 = vmatpush1.msra.mxu0 0.0
      %630 = vmatprep.subr.mxu0 0.0
      %631 = vmatpush1.msra.mxu0 0.0
      %632 = vmatprep.subr.mxu0 0.0
      %633 = vmatpush1.msra.mxu0 0.0
      %634 = vmatprep.subr.mxu0 0.0
      %635 = vmatpush1.msra.mxu0 0.0
      %636 = vmatprep.subr.mxu0 0.0
      %637 = vmatpush1.msra.mxu0 0.0
      %638 = vmatprep.subr.mxu0 0.0
      %639 = vmatpush1.msra.mxu0 0.0
      %640 = vmatprep.subr.mxu0 0.0
      %641 = vmatpush1.msra.mxu0 0.0
      %642 = vmatprep.subr.mxu0 0.0
      %643 = vmatpush1.msra.mxu0 0.0
      %644 = vmatprep.subr.mxu0 0.0
      %645 = vmatpush1.msra.mxu0 0.0
      %646 = vmatprep.subr.mxu0 0.0
      %647 = vmatpush1.msra.mxu0 0.0
      %648 = vmatprep.subr.mxu0 0.0
      %649 = vmatpush1.msra.mxu0 0.0
      %650 = vmatprep.subr.mxu0 0.0
      %651 = vmatpush1.msra.mxu0 0.0
      %652 = vmatprep.subr.mxu0 0.0
      %653 = vmatpush1.msra.mxu0 0.0
      %654 = vmatprep.subr.mxu0 0.0
      %655 = vmatpush1.msra.mxu0 0.0
      %656 = vmatprep.subr.mxu0 0.0
      %657 = vmatpush1.msra.mxu0 0.0
      %658 = vmatprep.subr.mxu0 0.0
      %659 = vmatpush1.msra.mxu0 0.0
      %660 = vmatprep.mubr.f32.mxu0 0.0
      %v661 = vand.u32 %v180, 4294901760
      %662 = vmatmul.mubr.f32.gmra.mrb[0].mxu0 %v661
      %v663 = vpop.f32.mrb[0].mxu0
      %v664 = vadd.f32 %v589, %v663
      %v665 = vpop.f32.mrb[0].mxu0
      %666 = vdwg.mxu0
      %vm667 = vcmask 64512
      %668 = vst.msk [vmem:[%s165] sm:$0xff] %vm667, %v664
      %p669 = scmp.lt.s32.totalorder %s14, 1
      %s670 = scalar_select %p669, %s14, 1
      %s671 = smul.addr %s670, 8
      %s672 = scalar_lea.vmem %s3, %s671
      // Predicated region
      $region33: #{tpu_custom_call.1} parent=31 // pred_check
        %p673 = pneg %p100
      $region34: #{tpu_custom_call.1} parent=31 // pred_check_branch
        %675 = sbr.rel (%p673) target = $region36
      $region35: #{tpu_custom_call.1} parent=31 // pred_region
        _
      $region36: #{tpu_custom_call.1} parent=31 // pred_fallthru
        _
    $region32: #{tpu_custom_call.1} parent=5 // pred_fallthru
      _
    %p676 = scmp.le.s32.totalorder 2, %s9
    // Predicated region
    $region37: #{tpu_custom_call.1} parent=5 // pred_check
      %p677 = pneg %p676
    $region38: #{tpu_custom_call.1} parent=5 // pred_check_branch
      %679 = sbr.rel (%p677) target = $region40
    $region39: #{tpu_custom_call.1} parent=5 // pred_region
      %s680 = ssub.s32 %s9, 2
      // Predicated region
      $region41: #{tpu_custom_call.1} parent=39 // pred_check
        %p681 = pneg %p106
      $region42: #{tpu_custom_call.1} parent=39 // pred_check_branch
        %683 = sbr.rel (%p681) target = $region44
      $region43: #{tpu_custom_call.1} parent=39 // pred_region
        %p684 = scmp.lt.s32.totalorder %s15, 1
        %s685 = scalar_select %p684, %s15, 1
        %s686 = smul.addr %s685, 8
        %s687 = scalar_lea.vmem %s3, %s686
      $region44: #{tpu_custom_call.1} parent=39 // pred_fallthru
        _
    $region40: #{tpu_custom_call.1} parent=5 // pred_fallthru
      _
  $region6: #{tpu_custom_call.1} parent=0 // loop_footer
    %s13 = sadd.s32 1, %s9
  $region7: #{tpu_custom_call.1} parent=0 // loop_footer_branch
    %8 = sbr.rel target = $region3
  $region8: #{tpu_custom_call.1} parent=0 // loop_exit
    _

</llo_original>
